<compile_context>
chip_gen: v7x
topology: tpu7x:2x2x1
jax: 0.10.0
libtpu: 0.0.40
codegen_flags: <defaults>
</compile_context>

<pallas_src>
import functools

import jax
import jax.numpy as jnp
from jax.experimental import pallas as pl
from jax.experimental.pallas import tpu as pltpu


_INV_SQRT2 = 0.7071067811865476


def _erf_poly(x):
    # Abramowitz & Stegun 7.1.26 polynomial erf, |error| <= 1.5e-7.
    a1, a2, a3, a4, a5 = (0.254829592, -0.284496736, 1.421413741,
                          -1.453152027, 1.061405429)
    p = 0.3275911
    ax = jnp.abs(x)
    t = 1.0 / (1.0 + p * ax)
    poly = ((((a5 * t + a4) * t + a3) * t + a2) * t + a1) * t
    y = 1.0 - poly * jnp.exp(-ax * ax)
    return jnp.where(x >= 0.0, y, -y)


def _apply_activation(h, name):
    if name == "relu":
        return jnp.maximum(h, 0.0)
    elif name == "tanh":
        return jnp.tanh(h)
    elif name == "sigmoid":
        return 1.0 / (1.0 + jnp.exp(-h))
    elif name == "GELU":
        # nn.GELU() default (exact/erf formulation), via polynomial erf.
        return 0.5 * h * (1.0 + _erf_poly(h * _INV_SQRT2))
    else:
        raise ValueError(f"Unsupported activation function: {name}")


def _mlp_kernel(*refs, activations):
    # refs = (x_ref, w0, b0, w1, b1, ..., w_last_col, b_last, o_ref)
    x_ref, *param_refs, o_ref = refs
    n_linear = len(param_refs) // 2

    h = x_ref[...]                                    # (state_dim, TB), compute dtype

    # Hidden layers: (out, in) @ (in, TB) MXU matmuls, low-precision operands,
    # f32 accumulation; bias add + activation in f32.
    for layer in range(n_linear - 1):
        w = param_refs[2 * layer][...]                # (out, in), compute dtype
        b = param_refs[2 * layer + 1][...]            # (out, 1), f32
        h = jnp.dot(w, h.astype(w.dtype),
                    preferred_element_type=jnp.float32) + b
        h = _apply_activation(h, activations[layer])  # f32, (out, TB)

    # Final hidden -> 1 layer in f32: VPU multiply + sublane reduce (an MXU
    # matmul with a single output column would be ~1% utilized), giving a
    # lane-dense (1, TB) output row.
    w_col = param_refs[-2][...]                        # (H_last, 1), f32
    b_fin = param_refs[-1][...]                        # (1, 1), f32
    out_row = jnp.sum(h.astype(jnp.float32) * w_col, axis=0, keepdims=True) + b_fin
    o_ref[...] = out_row.astype(o_ref.dtype)


def _round_up(n, m):
    return ((n + m - 1) // m) * m


def _vmem_capacity_bytes():
    try:
        info = pltpu.get_tpu_info()
        cap = getattr(info, "vmem_capacity_bytes", None)
        if cap:
            return int(cap)
    except Exception:
        pass
    return 64 * 1024 * 1024   # conservative default (v7x per-TC VMEM)


def _tile_vmem_bytes(tb, state_dim, params, compute_dtype):
    """Rough per-tile VMEM estimate (double-buffered blocks + live f32 temps)."""
    csize = jnp.dtype(compute_dtype).itemsize
    total = 2 * _round_up(state_dim, 8) * tb * csize        # x block, double-buffered
    total += 2 * 8 * tb * 4                                  # (1, tb) f32 output block
    max_h = state_dim
    for w, _ in params:
        out_dim, in_dim = w.shape
        total += 2 * _round_up(out_dim, 8) * _round_up(in_dim, 128) * 4
        total += 2 * _round_up(out_dim, 8) * 128 * 4
        max_h = max(max_h, out_dim)
    total += 3 * _round_up(max_h, 8) * tb * 4                # live f32 intermediates
    return total


def value_network_forward(x, params, activations, *, block_batch=8192,
                          compute_dtype=jnp.bfloat16):
    """ValueNetwork MLP forward pass with a batch-tiled Pallas TPU kernel.

    x:           (B, state_dim) float32
    params:      list of (W, b) in PyTorch layout: W (out_dim, in_dim), b (out_dim,)
    activations: one activation name per hidden layer
    returns:     (B, 1) float32
    """
    B, state_dim = x.shape
    n_linear = len(params)
    if len(activations) != n_linear - 1:
        raise ValueError("need exactly one activation per hidden layer")
    if params[-1][0].shape[0] != 1:
        raise ValueError("final layer must map hidden -> 1")

    # ---- batch-tile selection --------------------------------------------
    vmem_cap = _vmem_capacity_bytes()                  # 64 MiB (v7x) / 128 MiB (v5e/v6e)
    vmem_limit = int(min(vmem_cap * 3 // 4, 112 * 1024 * 1024))
    tile_budget = vmem_limit // 2

    tb_cap = max(128, _round_up(block_batch, 128))
    while tb_cap > 128 and _tile_vmem_bytes(tb_cap, state_dim, params,
                                            compute_dtype) > tile_budget:
        tb_cap = max(128, (tb_cap // 2) // 128 * 128)

    # >=2 tiles whenever the batch allows it (v7x megacore gets both TCs via
    # the "parallel" axis); otherwise one lane-dense 128-wide tile.  No host
    # padding: the ragged last block uses masked OOB reads/writes.
    if B <= 128:
        tb = 128
    else:
        tb = min(tb_cap, _round_up(pl.cdiv(B, 2), 128))
    num_tiles = pl.cdiv(B, tb)

    # ---- operands ----------------------------------------------------------
    # Single fused transpose+cast pass over x: (B, state_dim) f32 -> (state_dim, B)
    # compute_dtype.  Batch on the lane axis => contiguous DMA lines, no
    # in-kernel relayout.  This is the only wrapper-side pass over x.
    xt = jnp.asarray(x.T, compute_dtype)

    operands = [xt]
    # If a trace ever shows exposed input DMA, bump to pipeline_mode=pl.Buffered(3).
    in_specs = [pl.BlockSpec((state_dim, tb), lambda i: (0, i))]

    for layer, (w, b) in enumerate(params):
        out_dim, in_dim = w.shape
        if layer == n_linear - 1:
            # Final layer stays f32 (also when n_linear == 1): (in_dim, 1) column.
            wk = jnp.asarray(w, jnp.float32).reshape(in_dim, 1)
            bk = jnp.asarray(b, jnp.float32).reshape(1, 1)
        else:
            wk = jnp.asarray(w, compute_dtype)                  # (out, in)
            bk = jnp.asarray(b, jnp.float32).reshape(out_dim, 1)
        operands += [wk, bk]
        # Constant index_maps -> weights/biases stay VMEM-resident across tiles.
        in_specs += [pl.BlockSpec(wk.shape, lambda i: (0, 0)),
                     pl.BlockSpec(bk.shape, lambda i: (0, 0))]

    # Advisory cost estimate so XLA can schedule surrounding ops sensibly.
    flops = 2 * B * sum(int(w.shape[0]) * int(w.shape[1]) for w, _ in params)
    transcendentals = B * sum(int(w.shape[0])
                              for (w, _), a in zip(params[:-1], activations)
                              if a in ("tanh", "sigmoid", "GELU"))
    bytes_accessed = (B * state_dim * jnp.dtype(compute_dtype).itemsize + B * 4
                      + sum(int(w.size) * 4 + int(b.size) * 4 for w, b in params))

    kernel = functools.partial(_mlp_kernel, activations=tuple(activations))

    out_row = pl.pallas_call(
        kernel,
        out_shape=jax.ShapeDtypeStruct((1, B), jnp.float32),
        grid_spec=pltpu.PrefetchScalarGridSpec(
            num_scalar_prefetch=0,
            grid=(num_tiles,),
            in_specs=in_specs,
            out_specs=pl.BlockSpec((1, tb), lambda i: (0, i)),
        ),
        compiler_params=pltpu.CompilerParams(
            dimension_semantics=("parallel",),    # v7x megacore; no-op on v5e/v6e
            vmem_limit_bytes=vmem_limit,
        ),
        cost_estimate=pl.CostEstimate(flops=flops,
                                      transcendentals=transcendentals,
                                      bytes_accessed=bytes_accessed),
    )(*operands)

    return out_row.reshape(B, 1)


def init_value_network_params(key, state_dim, hidden_layers):
    """Deterministic init mimicking nn.Linear default (uniform +-1/sqrt(fan_in)).

    Returns params in PyTorch layout: W (out_dim, in_dim), b (out_dim,).
    """
    dims = [state_dim] + list(hidden_layers) + [1]
    params = []
    for i in range(len(dims) - 1):
        in_dim, out_dim = dims[i], dims[i + 1]
        key, kw, kb = jax.random.split(key, 3)
        bound = float(in_dim) ** -0.5
        w = jax.random.uniform(kw, (out_dim, in_dim), jnp.float32, -bound, bound)
        b = jax.random.uniform(kb, (out_dim,), jnp.float32, -bound, bound)
        params.append((w, b))
    return params


def value_network_ref(x, params, activations, compute_dtype=jnp.float32):
    """Plain-JAX reference mirroring the kernel's dtype handling."""
    n_linear = len(params)
    h = x.astype(compute_dtype)
    for layer in range(n_linear - 1):
        w, b = params[layer]
        h = jnp.dot(h.astype(compute_dtype), w.astype(compute_dtype).T,
                    preferred_element_type=jnp.float32) + b.astype(jnp.float32)
        h = _apply_activation(h, activations[layer])
    w, b = params[-1]
    return (jnp.dot(h.astype(jnp.float32), w.astype(jnp.float32).T,
                    precision="highest") + b.astype(jnp.float32))


if __name__ == "__main__":
    state_dim = 8
    key = jax.random.PRNGKey(0)

    # --- config 1: relu + tanh hidden stack ---------------------------------
    hidden_layers = [32, 32]
    activations = ["relu", "tanh"]
    key, kp = jax.random.split(key)
    params = init_value_network_params(kp, state_dim, hidden_layers)

    # Small single-tile batch, f32 compute path.
    batch = 8
    key, kx = jax.random.split(key)
    x = jax.random.normal(kx, (batch, state_dim), jnp.float32)
    out_f32 = jax.block_until_ready(
        value_network_forward(x, params, activations, compute_dtype=jnp.float32))
    ref_f32 = value_network_ref(x, params, activations, jnp.float32)
    assert out_f32.shape == (batch, 1)
    assert jnp.allclose(out_f32, ref_f32, atol=2e-2, rtol=2e-2)

    # Same inputs, default bf16-streamed path.
    out_bf16 = jax.block_until_ready(value_network_forward(x, params, activations))
    ref_bf16 = value_network_ref(x, params, activations, jnp.bfloat16)
    assert out_bf16.shape == (batch, 1)
    assert jnp.allclose(out_bf16, ref_bf16, atol=2e-2, rtol=2e-2)

    # Multi-tile, non-divisible batch (ragged last block, no host padding).
    batch2 = 300
    key, kx2 = jax.random.split(key)
    x2 = jax.random.normal(kx2, (batch2, state_dim), jnp.float32)
    out2 = jax.block_until_ready(
        value_network_forward(x2, params, activations, block_batch=256))
    ref2 = value_network_ref(x2, params, activations, jnp.bfloat16)
    assert out2.shape == (batch2, 1)
    assert jnp.allclose(out2, ref2, atol=2e-2, rtol=2e-2)

    # --- config 2: sigmoid + GELU activations --------------------------------
    hidden_layers_b = [16, 16]
    activations_b = ["sigmoid", "GELU"]
    key, kpb = jax.random.split(key)
    params_b = init_value_network_params(kpb, state_dim, hidden_layers_b)
    batch3 = 64
    key, kx3 = jax.random.split(key)
    x3 = jax.random.normal(kx3, (batch3, state_dim), jnp.float32)
    out3 = jax.block_until_ready(value_network_forward(x3, params_b, activations_b))
    ref3 = value_network_ref(x3, params_b, activations_b, jnp.bfloat16)
    assert out3.shape == (batch3, 1)
    assert jnp.allclose(out3, ref3, atol=2e-2, rtol=2e-2)

    # --- config 3: degenerate network, no hidden layers (Linear(state_dim,1)) -
    key, kpc = jax.random.split(key)
    params_c = init_value_network_params(kpc, state_dim, [])
    out4 = jax.block_until_ready(value_network_forward(x3, params_c, []))
    ref4 = value_network_ref(x3, params_c, [], jnp.bfloat16)
    assert out4.shape == (batch3, 1)
    assert jnp.allclose(out4, ref4, atol=2e-2, rtol=2e-2)

    print("KERNEL_OK")
</pallas_src>

<mosaic_0001>
module attributes {stable_mosaic.version = 11 : i64} {
  func.func @_mlp_kernel(%arg0: i32, %arg1: memref<8x128xf32, #tpu.memory_space<vmem>>, %arg2: memref<32x8xf32, #tpu.memory_space<vmem>>, %arg3: memref<32x1xf32, #tpu.memory_space<vmem>>, %arg4: memref<32x32xf32, #tpu.memory_space<vmem>>, %arg5: memref<32x1xf32, #tpu.memory_space<vmem>>, %arg6: memref<32x1xf32, #tpu.memory_space<vmem>>, %arg7: memref<1x1xf32, #tpu.memory_space<vmem>>, %arg8: memref<1x128xf32, #tpu.memory_space<vmem>>) attributes {dimension_semantics = [#tpu.dimension_semantics<parallel>], iteration_bounds = array<i64: 1>, scalar_prefetch = 0 : i64, scratch_operands = 0 : i64, tpu.core_type = #tpu.core_type<tc>, window_params = [{transform_indices = @transform_0, window_bounds = array<i64: 8, 128>}, {pipeline_mode = #tpu.pipeline_mode<synchronous>, transform_indices = @transform_1, window_bounds = array<i64: 32, 8>}, {pipeline_mode = #tpu.pipeline_mode<synchronous>, transform_indices = @transform_2, window_bounds = array<i64: 32, 1>}, {pipeline_mode = #tpu.pipeline_mode<synchronous>, transform_indices = @transform_3, window_bounds = array<i64: 32, 32>}, {pipeline_mode = #tpu.pipeline_mode<synchronous>, transform_indices = @transform_4, window_bounds = array<i64: 32, 1>}, {pipeline_mode = #tpu.pipeline_mode<synchronous>, transform_indices = @transform_5, window_bounds = array<i64: 32, 1>}, {pipeline_mode = #tpu.pipeline_mode<synchronous>, transform_indices = @transform_6, window_bounds = array<i64: 1, 1>}, {transform_indices = @transform_7, window_bounds = array<i64: 1, 128>}]} {
    %c0 = arith.constant 0 : index
    %c0_0 = arith.constant 0 : index
    %0 = vector.load %arg1[%c0, %c0_0] : memref<8x128xf32, #tpu.memory_space<vmem>>, vector<8x128xf32>
    %c0_1 = arith.constant 0 : index
    %c0_2 = arith.constant 0 : index
    %1 = vector.load %arg2[%c0_1, %c0_2] : memref<32x8xf32, #tpu.memory_space<vmem>>, vector<32x8xf32>
    %c0_3 = arith.constant 0 : index
    %c0_4 = arith.constant 0 : index
    %2 = vector.load %arg3[%c0_3, %c0_4] : memref<32x1xf32, #tpu.memory_space<vmem>>, vector<32x1xf32>
    %cst = arith.constant dense<0.000000e+00> : vector<32x128xf32>
    %3 = tpu.matmul %1, %0, %cst {dimension_numbers = #tpu.dot_dimension_numbers<[1], [0], [0], [1], [0, 0, 1, 1], [], []>} : vector<32x8xf32>, vector<8x128xf32>, vector<32x128xf32> -> vector<32x128xf32>
    %4 = vector.broadcast %2 : vector<32x1xf32> to vector<32x128xf32>
    %5 = arith.addf %3, %4 : vector<32x128xf32>
    %cst_5 = arith.constant 0.000000e+00 : f32
    %6 = vector.broadcast %cst_5 : f32 to vector<32x128xf32>
    %7 = arith.maximumf %5, %6 : vector<32x128xf32>
    %c0_6 = arith.constant 0 : index
    %c0_7 = arith.constant 0 : index
    %8 = vector.load %arg4[%c0_6, %c0_7] : memref<32x32xf32, #tpu.memory_space<vmem>>, vector<32x32xf32>
    %c0_8 = arith.constant 0 : index
    %c0_9 = arith.constant 0 : index
    %9 = vector.load %arg5[%c0_8, %c0_9] : memref<32x1xf32, #tpu.memory_space<vmem>>, vector<32x1xf32>
    %cst_10 = arith.constant dense<0.000000e+00> : vector<32x128xf32>
    %10 = tpu.matmul %8, %7, %cst_10 {dimension_numbers = #tpu.dot_dimension_numbers<[1], [0], [0], [1], [0, 0, 1, 1], [], []>} : vector<32x32xf32>, vector<32x128xf32>, vector<32x128xf32> -> vector<32x128xf32>
    %11 = vector.broadcast %9 : vector<32x1xf32> to vector<32x128xf32>
    %12 = arith.addf %10, %11 : vector<32x128xf32>
    %13 = math.tanh %12 : vector<32x128xf32>
    %c0_11 = arith.constant 0 : index
    %c0_12 = arith.constant 0 : index
    %14 = vector.load %arg6[%c0_11, %c0_12] : memref<32x1xf32, #tpu.memory_space<vmem>>, vector<32x1xf32>
    %c0_13 = arith.constant 0 : index
    %c0_14 = arith.constant 0 : index
    %15 = vector.load %arg7[%c0_13, %c0_14] : memref<1x1xf32, #tpu.memory_space<vmem>>, vector<1x1xf32>
    %16 = vector.broadcast %14 : vector<32x1xf32> to vector<32x128xf32>
    %17 = arith.mulf %13, %16 : vector<32x128xf32>
    %cst_15 = arith.constant dense<0.000000e+00> : vector<128xf32>
    %18 = vector.multi_reduction <add>, %17, %cst_15 [0] : vector<32x128xf32> to vector<128xf32>
    %19 = vector.shape_cast %18 : vector<128xf32> to vector<1x128xf32>
    %20 = vector.broadcast %15 : vector<1x1xf32> to vector<1x128xf32>
    %21 = arith.addf %19, %20 : vector<1x128xf32>
    %c0_16 = arith.constant 0 : index
    %c0_17 = arith.constant 0 : index
    %22 = vector.load %arg8[%c0_16, %c0_17] : memref<1x128xf32, #tpu.memory_space<vmem>>, vector<1x128xf32>
    tpu.vector_store %arg8[%c0_16, %c0_17], %21 {strides = array<i32>} : memref<1x128xf32, #tpu.memory_space<vmem>>, vector<1x128xf32>,
    return
  }
  func.func @transform_0(%arg0: i32) -> (i32, i32) {
    %c0_i32 = arith.constant 0 : i32
    %c0_i32_0 = arith.constant 0 : i32
    return %c0_i32, %arg0 : i32, i32
  }
  func.func @transform_1(%arg0: i32) -> (i32, i32) {
    %c0_i32 = arith.constant 0 : i32
    %c0_i32_0 = arith.constant 0 : i32
    %c0_i32_1 = arith.constant 0 : i32
    return %c0_i32, %c0_i32_0 : i32, i32
  }
  func.func @transform_2(%arg0: i32) -> (i32, i32) {
    %c0_i32 = arith.constant 0 : i32
    %c0_i32_0 = arith.constant 0 : i32
    %c0_i32_1 = arith.constant 0 : i32
    return %c0_i32, %c0_i32_0 : i32, i32
  }
  func.func @transform_3(%arg0: i32) -> (i32, i32) {
    %c0_i32 = arith.constant 0 : i32
    %c0_i32_0 = arith.constant 0 : i32
    %c0_i32_1 = arith.constant 0 : i32
    return %c0_i32, %c0_i32_0 : i32, i32
  }
  func.func @transform_4(%arg0: i32) -> (i32, i32) {
    %c0_i32 = arith.constant 0 : i32
    %c0_i32_0 = arith.constant 0 : i32
    %c0_i32_1 = arith.constant 0 : i32
    return %c0_i32, %c0_i32_0 : i32, i32
  }
  func.func @transform_5(%arg0: i32) -> (i32, i32) {
    %c0_i32 = arith.constant 0 : i32
    %c0_i32_0 = arith.constant 0 : i32
    %c0_i32_1 = arith.constant 0 : i32
    return %c0_i32, %c0_i32_0 : i32, i32
  }
  func.func @transform_6(%arg0: i32) -> (i32, i32) {
    %c0_i32 = arith.constant 0 : i32
    %c0_i32_0 = arith.constant 0 : i32
    %c0_i32_1 = arith.constant 0 : i32
    return %c0_i32, %c0_i32_0 : i32, i32
  }
  func.func @transform_7(%arg0: i32) -> (i32, i32) {
    %c0_i32 = arith.constant 0 : i32
    %c0_i32_0 = arith.constant 0 : i32
    return %c0_i32, %arg0 : i32, i32
  }
}

</mosaic_0001>

<llo_original>
// kernel: tpu_custom_call.1
$region0: #{tpu_custom_call.1}
  #allocation0 [shape = 'u32[]', space=smem, size = 0x4, offset = 0x4, fixed_abs, tag = 'smem constant byte address 0x4 - core index']
  #allocation1 [shape = 'u32[144,128]{1,0:T(1,128)}', space=vmem, size = 0x12000, scoped, tag = 'internal scratch']
  #allocation2 [shape = 'f32[1,1]{1,0:T(1,128)S(1)}', space=vmem, size = 0x200, scoped, tag = 'scoped memory for tpu_custom_call.1']
  %s0 = inlined_call_operand.vmem [shape: f32[8,8], index: 0, kind: input, shape index: {}]
  %s1 = inlined_call_operand.vmem [shape: f32[32,8], index: 1, kind: input, shape index: {}]
  %s2 = inlined_call_operand.vmem [shape: f32[32,1], index: 2, kind: input, shape index: {}]
  %s3 = inlined_call_operand.vmem [shape: f32[32,32], index: 3, kind: input, shape index: {}]
  %s4 = inlined_call_operand.vmem [shape: f32[32,1], index: 4, kind: input, shape index: {}]
  %s5 = inlined_call_operand.vmem [shape: f32[32,1], index: 5, kind: input, shape index: {}]
  %s6 = inlined_call_operand.<no memory space> [shape: f32[1,1], index: 6, kind: input, shape index: {}]
  %s7 = inlined_call_operand.hbm [shape: f32[1,8], index: 7, kind: output, shape index: {}]
  %s8 = sld [smem:[#allocation0]]
  $region38: #{tpu_custom_call.1} parent=0
    _
  %s10 = ssub.s32 1, %s8
  %s11 = scalar_select 0, %s10, %s8
  %v12 = vstv %s6
  %13 = vst [vmem:[#allocation2] sm:$0x1] %v12
  $region1: #{tpu_custom_call.1} parent=0
    #allocation3 [shape = 'u8[512]{0}', space=vmem, size = 0x400, scoped, tag = 'output window, operand 0, single buffered']
    #allocation4 [shape = 's32[1]{0}', space=sflag, size = 0x4, scoped, tag = 'scoped memory for tpu_custom_call.1']
    %14 = vsyncpa [#allocation4], 0
    // Predicated region
    $region2: #{tpu_custom_call.1} parent=1 // pred_check
      _
    $region3: #{tpu_custom_call.1} parent=1 // pred_check_branch
      %16 = sbr.rel (0) target = $region5
    $region4: #{tpu_custom_call.1} parent=1 // pred_region
      _
    $region5: #{tpu_custom_call.1} parent=1 // pred_fallthru
      _
    // Predicated region
    $region6: #{tpu_custom_call.1} parent=1 // pred_check
      _
    $region7: #{tpu_custom_call.1} parent=1 // pred_check_branch
      %18 = sbr.rel (0) target = $region9
    $region8: #{tpu_custom_call.1} parent=1 // pred_region
      _
    $region9: #{tpu_custom_call.1} parent=1 // pred_fallthru
      _
    // Predicated region
    $region10: #{tpu_custom_call.1} parent=1 // pred_check
      _
    $region11: #{tpu_custom_call.1} parent=1 // pred_check_branch
      %20 = sbr.rel (0) target = $region13
    $region12: #{tpu_custom_call.1} parent=1 // pred_region
      _
    $region13: #{tpu_custom_call.1} parent=1 // pred_fallthru
      _
    // Predicated region
    $region14: #{tpu_custom_call.1} parent=1 // pred_check
      _
    $region15: #{tpu_custom_call.1} parent=1 // pred_check_branch
      %22 = sbr.rel (0) target = $region17
    $region16: #{tpu_custom_call.1} parent=1 // pred_region
      _
    $region17: #{tpu_custom_call.1} parent=1 // pred_fallthru
      _
    // Predicated region
    $region18: #{tpu_custom_call.1} parent=1 // pred_check
      _
    $region19: #{tpu_custom_call.1} parent=1 // pred_check_branch
      %24 = sbr.rel (0) target = $region21
    $region20: #{tpu_custom_call.1} parent=1 // pred_region
      _
    $region21: #{tpu_custom_call.1} parent=1 // pred_fallthru
      _
    // Predicated region
    $region22: #{tpu_custom_call.1} parent=1 // pred_check
      _
    $region23: #{tpu_custom_call.1} parent=1 // pred_check_branch
      %26 = sbr.rel (0) target = $region25
    $region24: #{tpu_custom_call.1} parent=1 // pred_region
      _
    $region25: #{tpu_custom_call.1} parent=1 // pred_fallthru
      _
    // Predicated region
    $region26: #{tpu_custom_call.1} parent=1 // pred_check
      _
    $region27: #{tpu_custom_call.1} parent=1 // pred_check_branch
      %28 = sbr.rel (0) target = $region29
    $region28: #{tpu_custom_call.1} parent=1 // pred_region
      _
    $region29: #{tpu_custom_call.1} parent=1 // pred_fallthru
      _
    %v29 = vld [vmem:[%s0] sm:$0xff]
    %v30 = vld [vmem:[%s1] sm:$0xff]
    %v31 = vld [vmem:[%s1 + $0x8] sm:$0xff]
    %v32 = vld [vmem:[%s1 + $0x10] sm:$0xff]
    %v33 = vld [vmem:[%s1 + $0x18] sm:$0xff]
    %v34 = vld [vmem:[%s2] sm:$0xff]
    %v35 = vld [vmem:[%s2 + $0x8] sm:$0xff]
    %v36 = vld [vmem:[%s2 + $0x10] sm:$0xff]
    %v37 = vld [vmem:[%s2 + $0x18] sm:$0xff]
    %39 = vset.pattern.permute.xlu0 0
    %40 = vperm.xlu0 %39, %v34
    %v41 = vpop.permute.xlu0 %40
    %44 = vset.pattern.permute.xlu0 0
    %45 = vperm.xlu0 %44, %v35
    %v46 = vpop.permute.xlu0 %45
    %49 = vset.pattern.permute.xlu0 0
    %50 = vperm.xlu0 %49, %v36
    %v51 = vpop.permute.xlu0 %50
    %54 = vset.pattern.permute.xlu0 0
    %55 = vperm.xlu0 %54, %v37
    %v56 = vpop.permute.xlu0 %55
    %vm58 = vcmask 64512
    %v60 = vsel %vm58, %v30, 0
    %v63 = vsel %vm58, %v31, 0
    %v66 = vsel %vm58, %v32, 0
    %v69 = vsel %vm58, %v33, 0
    %71 = vmatprep.subr.mxu0 0.0
    %72 = vmatpush1.msra.mxu0 %v29
    %73 = vmatprep.subr.mxu0 0.0
    %74 = vmatpush1.msra.mxu0 0.0
    %75 = vmatprep.subr.mxu0 0.0
    %76 = vmatpush1.msra.mxu0 0.0
    %77 = vmatprep.subr.mxu0 0.0
    %78 = vmatpush1.msra.mxu0 0.0
    %79 = vmatprep.subr.mxu0 0.0
    %80 = vmatpush1.msra.mxu0 0.0
    %81 = vmatprep.subr.mxu0 0.0
    %82 = vmatpush1.msra.mxu0 0.0
    %83 = vmatprep.subr.mxu0 0.0
    %84 = vmatpush1.msra.mxu0 0.0
    %85 = vmatprep.subr.mxu0 0.0
    %86 = vmatpush1.msra.mxu0 0.0
    %87 = vmatprep.subr.mxu0 0.0
    %88 = vmatpush1.msra.mxu0 0.0
    %89 = vmatprep.subr.mxu0 0.0
    %90 = vmatpush1.msra.mxu0 0.0
    %91 = vmatprep.subr.mxu0 0.0
    %92 = vmatpush1.msra.mxu0 0.0
    %93 = vmatprep.subr.mxu0 0.0
    %94 = vmatpush1.msra.mxu0 0.0
    %95 = vmatprep.subr.mxu0 0.0
    %96 = vmatpush1.msra.mxu0 0.0
    %97 = vmatprep.subr.mxu0 0.0
    %98 = vmatpush1.msra.mxu0 0.0
    %99 = vmatprep.subr.mxu0 0.0
    %100 = vmatpush1.msra.mxu0 0.0
    %101 = vmatprep.subr.mxu0 0.0
    %102 = vmatpush1.msra.mxu0 0.0
    %103 = vmatprep.subr.mxu0 0.0
    %104 = vmatpush1.msra.mxu0 0.0
    %105 = vmatprep.subr.mxu0 0.0
    %106 = vmatpush1.msra.mxu0 0.0
    %107 = vmatprep.subr.mxu0 0.0
    %108 = vmatpush1.msra.mxu0 0.0
    %109 = vmatprep.subr.mxu0 0.0
    %110 = vmatpush1.msra.mxu0 0.0
    %111 = vmatprep.subr.mxu0 0.0
    %112 = vmatpush1.msra.mxu0 0.0
    %113 = vmatprep.subr.mxu0 0.0
    %114 = vmatpush1.msra.mxu0 0.0
    %115 = vmatprep.subr.mxu0 0.0
    %116 = vmatpush1.msra.mxu0 0.0
    %117 = vmatprep.subr.mxu0 0.0
    %118 = vmatpush1.msra.mxu0 0.0
    %119 = vmatprep.subr.mxu0 0.0
    %120 = vmatpush1.msra.mxu0 0.0
    %121 = vmatprep.subr.mxu0 0.0
    %122 = vmatpush1.msra.mxu0 0.0
    %123 = vmatprep.subr.mxu0 0.0
    %124 = vmatpush1.msra.mxu0 0.0
    %125 = vmatprep.subr.mxu0 0.0
    %126 = vmatpush1.msra.mxu0 0.0
    %127 = vmatprep.subr.mxu0 0.0
    %128 = vmatpush1.msra.mxu0 0.0
    %129 = vmatprep.subr.mxu0 0.0
    %130 = vmatpush1.msra.mxu0 0.0
    %131 = vmatprep.subr.mxu0 0.0
    %132 = vmatpush1.msra.mxu0 0.0
    %133 = vmatprep.subr.mxu0 0.0
    %134 = vmatpush1.msra.mxu0 0.0
    %135 = vmatprep.mubr.f32.mxu0 0.0
    %136 = vmatmul.mubr.f32.gmra.mrb[0].mxu0 %v60
    %v137 = vpop.f32.mrb[0].mxu0
    %v138 = vadd.f32 %v41, %v137
    %v139 = vpop.f32.mrb[0].mxu0
    %140 = vmatprep.mubr.f32.mxu0 0.0
    %141 = vmatmul.mubr.f32.gmra.mrb[0].mxu0 %v63
    %v142 = vpop.f32.mrb[0].mxu0
    %v143 = vadd.f32 %v46, %v142
    %v144 = vpop.f32.mrb[0].mxu0
    %145 = vmatprep.mubr.f32.mxu0 0.0
    %146 = vmatmul.mubr.f32.gmra.mrb[0].mxu0 %v66
    %v147 = vpop.f32.mrb[0].mxu0
    %v148 = vadd.f32 %v51, %v147
    %v149 = vpop.f32.mrb[0].mxu0
    %150 = vmatprep.mubr.f32.mxu0 0.0
    %151 = vmatmul.mubr.f32.gmra.mrb[0].mxu0 %v69
    %v152 = vpop.f32.mrb[0].mxu0
    %v153 = vadd.f32 %v56, %v152
    %v154 = vpop.f32.mrb[0].mxu0
    %155 = vdwg.mxu0
    %v156 = vmax.f32 %v138, 0.0
    %v157 = vmax.f32 %v143, 0.0
    %v158 = vmax.f32 %v148, 0.0
    %v159 = vmax.f32 %v153, 0.0
    %v160 = vld [vmem:[%s3] sm:$0xff]
    %v161 = vld [vmem:[%s3 + $0x8] sm:$0xff]
    %v162 = vld [vmem:[%s3 + $0x10] sm:$0xff]
    %v163 = vld [vmem:[%s3 + $0x18] sm:$0xff]
    %v164 = vld [vmem:[%s4] sm:$0xff]
    %v165 = vld [vmem:[%s4 + $0x8] sm:$0xff]
    %v166 = vld [vmem:[%s4 + $0x10] sm:$0xff]
    %v167 = vld [vmem:[%s4 + $0x18] sm:$0xff]
    %169 = vset.pattern.permute.xlu0 0
    %170 = vperm.xlu0 %169, %v164
    %v171 = vpop.permute.xlu0 %170
    %174 = vset.pattern.permute.xlu0 0
    %175 = vperm.xlu0 %174, %v165
    %v176 = vpop.permute.xlu0 %175
    %179 = vset.pattern.permute.xlu0 0
    %180 = vperm.xlu0 %179, %v166
    %v181 = vpop.permute.xlu0 %180
    %184 = vset.pattern.permute.xlu0 0
    %185 = vperm.xlu0 %184, %v167
    %v186 = vpop.permute.xlu0 %185
    %vm188 = vcmask 261120
    %v190 = vsel %vm188, %v160, 0
    %v193 = vsel %vm188, %v161, 0
    %v196 = vsel %vm188, %v162, 0
    %v199 = vsel %vm188, %v163, 0
    %201 = vmatprep.subr.mxu0 0.0
    %202 = vmatpush1.msra.mxu0 %v156
    %203 = vmatprep.subr.mxu0 0.0
    %204 = vmatpush1.msra.mxu0 %v157
    %205 = vmatprep.subr.mxu0 0.0
    %206 = vmatpush1.msra.mxu0 %v158
    %207 = vmatprep.subr.mxu0 0.0
    %208 = vmatpush1.msra.mxu0 %v159
    %209 = vmatprep.subr.mxu0 0.0
    %210 = vmatpush1.msra.mxu0 0.0
    %211 = vmatprep.subr.mxu0 0.0
    %212 = vmatpush1.msra.mxu0 0.0
    %213 = vmatprep.subr.mxu0 0.0
    %214 = vmatpush1.msra.mxu0 0.0
    %215 = vmatprep.subr.mxu0 0.0
    %216 = vmatpush1.msra.mxu0 0.0
    %217 = vmatprep.subr.mxu0 0.0
    %218 = vmatpush1.msra.mxu0 0.0
    %219 = vmatprep.subr.mxu0 0.0
    %220 = vmatpush1.msra.mxu0 0.0
    %221 = vmatprep.subr.mxu0 0.0
    %222 = vmatpush1.msra.mxu0 0.0
    %223 = vmatprep.subr.mxu0 0.0
    %224 = vmatpush1.msra.mxu0 0.0
    %225 = vmatprep.subr.mxu0 0.0
    %226 = vmatpush1.msra.mxu0 0.0
    %227 = vmatprep.subr.mxu0 0.0
    %228 = vmatpush1.msra.mxu0 0.0
    %229 = vmatprep.subr.mxu0 0.0
    %230 = vmatpush1.msra.mxu0 0.0
    %231 = vmatprep.subr.mxu0 0.0
    %232 = vmatpush1.msra.mxu0 0.0
    %233 = vmatprep.subr.mxu0 0.0
    %234 = vmatpush1.msra.mxu0 0.0
    %235 = vmatprep.subr.mxu0 0.0
    %236 = vmatpush1.msra.mxu0 0.0
    %237 = vmatprep.subr.mxu0 0.0
    %238 = vmatpush1.msra.mxu0 0.0
    %239 = vmatprep.subr.mxu0 0.0
    %240 = vmatpush1.msra.mxu0 0.0
    %241 = vmatprep.subr.mxu0 0.0
    %242 = vmatpush1.msra.mxu0 0.0
    %243 = vmatprep.subr.mxu0 0.0
    %244 = vmatpush1.msra.mxu0 0.0
    %245 = vmatprep.subr.mxu0 0.0
    %246 = vmatpush1.msra.mxu0 0.0
    %247 = vmatprep.subr.mxu0 0.0
    %248 = vmatpush1.msra.mxu0 0.0
    %249 = vmatprep.subr.mxu0 0.0
    %250 = vmatpush1.msra.mxu0 0.0
    %251 = vmatprep.subr.mxu0 0.0
    %252 = vmatpush1.msra.mxu0 0.0
    %253 = vmatprep.subr.mxu0 0.0
    %254 = vmatpush1.msra.mxu0 0.0
    %255 = vmatprep.subr.mxu0 0.0
    %256 = vmatpush1.msra.mxu0 0.0
    %257 = vmatprep.subr.mxu0 0.0
    %258 = vmatpush1.msra.mxu0 0.0
    %259 = vmatprep.subr.mxu0 0.0
    %260 = vmatpush1.msra.mxu0 0.0
    %261 = vmatprep.subr.mxu0 0.0
    %262 = vmatpush1.msra.mxu0 0.0
    %263 = vmatprep.subr.mxu0 0.0
    %264 = vmatpush1.msra.mxu0 0.0
    %265 = vmatprep.mubr.f32.mxu0 0.0
    %266 = vmatmul.mubr.f32.gmra.mrb[0].mxu0 %v190
    %v267 = vpop.f32.mrb[0].mxu0
    %v268 = vadd.f32 %v171, %v267
    %v269 = vpop.f32.mrb[0].mxu0
    %270 = vmatprep.mubr.f32.mxu0 0.0
    %271 = vmatmul.mubr.f32.gmra.mrb[0].mxu0 %v193
    %v272 = vpop.f32.mrb[0].mxu0
    %v273 = vadd.f32 %v176, %v272
    %v274 = vpop.f32.mrb[0].mxu0
    %275 = vmatprep.mubr.f32.mxu0 0.0
    %276 = vmatmul.mubr.f32.gmra.mrb[0].mxu0 %v196
    %v277 = vpop.f32.mrb[0].mxu0
    %v278 = vadd.f32 %v181, %v277
    %v279 = vpop.f32.mrb[0].mxu0
    %280 = vmatprep.mubr.f32.mxu0 0.0
    %281 = vmatmul.mubr.f32.gmra.mrb[0].mxu0 %v199
    %v282 = vpop.f32.mrb[0].mxu0
    %v283 = vadd.f32 %v186, %v282
    %v284 = vpop.f32.mrb[0].mxu0
    %285 = vdwg.mxu0
    %v286 = vtanh.pop %v268
    %v287 = vtanh.pop %v273
    %v288 = vtanh.pop %v278
    %v289 = vtanh.pop %v283
    %v290 = vld [vmem:[%s5] sm:$0xff]
    %v291 = vld [vmem:[%s5 + $0x8] sm:$0xff]
    %v292 = vld [vmem:[%s5 + $0x10] sm:$0xff]
    %v293 = vld [vmem:[%s5 + $0x18] sm:$0xff]
    %v294 = vld [vmem:[#allocation2] sm:$0x1]
    %296 = vset.pattern.permute.xlu0 0
    %297 = vperm.xlu0 %296, %v290
    %v298 = vpop.permute.xlu0 %297
    %301 = vset.pattern.permute.xlu0 0
    %302 = vperm.xlu0 %301, %v291
    %v303 = vpop.permute.xlu0 %302
    %306 = vset.pattern.permute.xlu0 0
    %307 = vperm.xlu0 %306, %v292
    %v308 = vpop.permute.xlu0 %307
    %311 = vset.pattern.permute.xlu0 0
    %312 = vperm.xlu0 %311, %v293
    %v313 = vpop.permute.xlu0 %312
    %v315 = vmul.f32 %v286, %v298
    %v316 = vmul.f32 %v287, %v303
    %v317 = vmul.f32 %v288, %v308
    %v318 = vmul.f32 %v289, %v313
    %v319 = vadd.f32 %v315, %v316
    %v320 = vadd.f32 %v319, %v317
    %v321 = vadd.f32 %v320, %v318
    %v322 = vrot.slane %v321, 4
    %v323 = vadd.f32 %v321, %v322
    %v324 = vrot.slane %v323, 2
    %v325 = vadd.f32 %v323, %v324
    %v326 = vrot.slane %v325, 1
    %v327 = vadd.f32 %v325, %v326
    %329 = vset.pattern.permute.xlu0 0
    %330 = vperm.xlu0 %329, %v294
    %v331 = vpop.permute.xlu0 %330
    %v333 = vlaneseq
    %v334 = vshrl.u32 %v333, 7
    %v335 = vsub.s32 0, %v334
    %v336 = vrot.slane %v331, %v335
    %v337 = vadd.f32 %v327, %v336
    %338 = vst [vmem:[#allocation3] sm:$0x1] %v337
    // Predicated region
    $region30: #{tpu_custom_call.1} parent=1 // pred_check
      _
    $region31: #{tpu_custom_call.1} parent=1 // pred_check_branch
      %340 = sbr.rel (0) target = $region33
    $region32: #{tpu_custom_call.1} parent=1 // pred_region
      %s342 = ssub.s32 16, 16
      %343 = vsyncadd [#allocation4], %s342
      %s345 = sshll.u32 [#allocation3], 4
      %s346 = int_to_ptr.vmem [resolvable:$true] %s345
      %348 = dma.vmem_to_hbm [thread:$0]  %s346, 16, %s7, [#allocation4]
    $region33: #{tpu_custom_call.1} parent=1 // pred_fallthru
      _
    // Predicated region
    $region34: #{tpu_custom_call.1} parent=1 // pred_check
      _
    $region35: #{tpu_custom_call.1} parent=1 // pred_check_branch
      %350 = sbr.rel (0) target = $region37
    $region36: #{tpu_custom_call.1} parent=1 // pred_region
      %351 = dma.done [#allocation4], 16
    $region37: #{tpu_custom_call.1} parent=1 // pred_fallthru
      _
    %352 = vsyncpa [#allocation4], 1

</llo_original>
